<compile_context>
chip_gen: v6e
topology: v6e:2x2x1
jax: 0.10.0
libtpu: 0.0.40
codegen_flags: <defaults>
</compile_context>

<pallas_src>
import functools

import jax
import jax.numpy as jnp
from jax.experimental import pallas as pl
from jax.experimental.pallas import tpu as pltpu

MAX_NORM = 1.0  # nn.Embedding(..., max_norm=1.0)


def _gather_renorm_kernel(row_tile, idx_ref, w_ref, out_ref):
    """Gather `row_tile` embedding rows and apply the max_norm renorm.

    idx_ref : SMEM (n_pad,) int32  -- scalar-prefetched flat landmark indices
    w_ref   : VMEM (V+1, D) f32    -- embedding table (row 0 = padding row)
    out_ref : VMEM (row_tile, D) f32
    """
    base = pl.program_id(0) * row_tile

    # Row gather: dynamic sublane slices from the VMEM-resident table.
    # row_tile is small and static, so a fully unrolled loop keeps every
    # destination offset static (only the source row index is dynamic).
    for r in range(row_tile):
        v = idx_ref[base + r]
        out_ref[pl.ds(r, 1), :] = w_ref[pl.ds(v, 1), :]

    # max_norm renorm applied post-gather; output-equivalent to
    # torch.embedding_renorm_ on the referenced rows (torch formula,
    # including the 1e-7 epsilon).  Padding rows are all-zero -> norm 0 ->
    # scale 1.0 branch, so they stay exactly zero.
    rows = out_ref[...]                                        # (row_tile, D)
    sumsq = jnp.sum(rows * rows, axis=-1, keepdims=True)       # (row_tile, 1)
    norm = jnp.sqrt(sumsq)
    scale = jnp.where(norm > MAX_NORM, MAX_NORM / (norm + 1e-7), 1.0)
    out_ref[...] = rows * scale


def semantic_embedding_matrix(idx, weight, landmark_yx, patch_yx, *, row_tile=128):
    """Returns (positions, features, mask) like SemanticEmbeddingMatrix.forward."""
    B, L = idx.shape
    V1, D = weight.shape

    # max_num_landmarks == 0 early return (host-side shape decision).
    if L == 0:
        return (jnp.zeros((B, 0, 2), jnp.float32),
                jnp.zeros((B, 0, D), jnp.float32),
                jnp.zeros((B, 0), jnp.bool_))

    n = B * L
    # Row tile: sublane-aligned (multiple of 8), no bigger than needed.
    row_tile = max(8, (row_tile // 8) * 8)
    row_tile = min(row_tile, pl.cdiv(n, 8) * 8)
    n_pad = pl.cdiv(n, row_tile) * row_tile
    grid = (n_pad // row_tile,)

    # Flat indices, padded with 0 (the padding row) to a multiple of row_tile.
    idx_flat = jnp.zeros((n_pad,), jnp.int32).at[:n].set(
        idx.reshape(-1).astype(jnp.int32))

    cost = pl.CostEstimate(
        flops=3 * n_pad * D,                      # square + sum + scale
        transcendentals=n_pad,                    # one sqrt per gathered row
        bytes_accessed=(V1 * D + n_pad * D) * 4 + n_pad * 4,
    )

    feats_flat = pl.pallas_call(
        functools.partial(_gather_renorm_kernel, row_tile),
        out_shape=jax.ShapeDtypeStruct((n_pad, D), jnp.float32),
        grid_spec=pltpu.PrefetchScalarGridSpec(
            num_scalar_prefetch=1,                # idx_flat -> SMEM
            grid=grid,
            in_specs=[
                # Full embedding table resident in VMEM (same block index at
                # every grid step, so it is not re-DMA'd per step).
                pl.BlockSpec((V1, D), lambda i, idx_sref: (0, 0)),
            ],
            out_specs=pl.BlockSpec((row_tile, D), lambda i, idx_sref: (i, 0)),
        ),
        compiler_params=pltpu.CompilerParams(
            dimension_semantics=("parallel",),    # rows are independent
            vmem_limit_bytes=32 * 1024 * 1024,    # safe on v5e/v6e/v7x
        ),
        cost_estimate=cost,
    )(idx_flat, weight)

    feats = feats_flat[:n].reshape(B, L, D)

    # Padding mask + positions-in-patch: trivial elementwise work with last
    # dims 8 / 2 (lane-sparse stores) -> plain JAX, fused by XLA.
    mask = idx == 0
    pos = jnp.where(mask[:, :, None], 0.0,
                    landmark_yx - patch_yx[:, None, :])
    return pos, feats, mask


def _reference(idx, weight, landmark_yx, patch_yx):
    norm = jnp.sqrt(jnp.sum(weight * weight, axis=-1, keepdims=True))
    w_rn = weight * jnp.where(norm > MAX_NORM, MAX_NORM / (norm + 1e-7), 1.0)
    feats = w_rn[idx]
    mask = idx == 0
    pos = jnp.where(mask[:, :, None], 0.0, landmark_yx - patch_yx[:, None, :])
    return pos, feats, mask


if __name__ == "__main__":
    # Small, deterministic synthetic problem consistent with the module:
    # vocabulary of 7 landmark types -> embedding table (8, 128), padding row 0.
    B = 2      # batch
    L = 8      # max_num_landmarks
    V = 7      # len(vocabulary)
    D = 128    # embedding_dim (multiple of 128 -> lane-dense stores)

    key = jax.random.PRNGKey(0)
    k_w, k_idx, k_lmk, k_patch = jax.random.split(key, 4)

    # nn.Embedding init: N(0, 1) rows; alternate row scales so that both the
    # "norm > 1 -> renorm" and "norm <= 1 -> keep" branches are exercised;
    # padding row 0 zeroed.
    weight = jax.random.normal(k_w, (V + 1, D), dtype=jnp.float32)
    row_scale = jnp.where(jnp.arange(V + 1) % 2 == 0, 0.05, 0.2)[:, None]
    weight = (weight * row_scale).at[0].set(0.0)

    # Landmark type indices in [1, V]; trailing slots padded with 0
    # (batch 0 has 6 landmarks, batch 1 has 4 -> matches the per-batch
    # variable-length landmark lists of the original module).
    idx = jax.random.randint(k_idx, (B, L), 1, V + 1, dtype=jnp.int32)
    num_landmarks = [6, 4]
    pad = jnp.arange(L)[None, :] >= jnp.asarray(num_landmarks)[:, None]
    idx = jnp.where(pad, 0, idx)

    landmark_yx = jax.random.normal(k_lmk, (B, L, 2), dtype=jnp.float32) * 100.0
    patch_yx = jax.random.normal(k_patch, (B, 2), dtype=jnp.float32) * 100.0

    pos, feats, mask = semantic_embedding_matrix(
        idx, weight, landmark_yx, patch_yx, row_tile=8)
    jax.block_until_ready((pos, feats, mask))

    pos_r, feats_r, mask_r = _reference(idx, weight, landmark_yx, patch_yx)
    assert jnp.allclose(feats, feats_r, atol=1e-5), "features mismatch"
    assert jnp.allclose(pos, pos_r, atol=1e-5), "positions mismatch"
    assert bool(jnp.all(mask == mask_r)), "mask mismatch"

    print("KERNEL_OK")
</pallas_src>

<mosaic_0001>
module attributes {stable_mosaic.version = 11 : i64} {
  func.func @_gather_renorm_kernel(%arg0: i32, %arg1: memref<16xi32, #tpu.memory_space<smem>>, %arg2: memref<8x128xf32, #tpu.memory_space<vmem>>, %arg3: memref<8x128xf32, #tpu.memory_space<vmem>>) attributes {dimension_semantics = [#tpu.dimension_semantics<parallel>], iteration_bounds = array<i64: 2>, scalar_prefetch = 1 : i64, scratch_operands = 0 : i64, tpu.core_type = #tpu.core_type<tc>, window_params = [{pipeline_mode = #tpu.pipeline_mode<synchronous>, transform_indices = @transform_0, window_bounds = array<i64: 8, 128>}, {transform_indices = @transform_1, window_bounds = array<i64: 8, 128>}]} {
    %c8_i32 = arith.constant 8 : i32
    %0 = arith.muli %arg0, %c8_i32 : i32
    %c0_i32 = arith.constant 0 : i32
    %1 = arith.addi %0, %c0_i32 : i32
    %2 = arith.index_cast %1 : i32 to index
    %3 = memref.load %arg1[%2] : memref<16xi32, #tpu.memory_space<smem>>
    %4 = arith.index_cast %3 : i32 to index
    %c0 = arith.constant 0 : index
    %5 = vector.load %arg2[%4, %c0] : memref<8x128xf32, #tpu.memory_space<vmem>>, vector<1x128xf32>
    %c0_0 = arith.constant 0 : index
    %c0_1 = arith.constant 0 : index
    %6 = vector.load %arg3[%c0_0, %c0_1] : memref<8x128xf32, #tpu.memory_space<vmem>>, vector<1x128xf32>
    tpu.vector_store %arg3[%c0_0, %c0_1], %5 {strides = array<i32>} : memref<8x128xf32, #tpu.memory_space<vmem>>, vector<1x128xf32>,
    %c1_i32 = arith.constant 1 : i32
    %7 = arith.addi %0, %c1_i32 : i32
    %8 = arith.index_cast %7 : i32 to index
    %9 = memref.load %arg1[%8] : memref<16xi32, #tpu.memory_space<smem>>
    %10 = arith.index_cast %9 : i32 to index
    %c0_2 = arith.constant 0 : index
    %11 = vector.load %arg2[%10, %c0_2] : memref<8x128xf32, #tpu.memory_space<vmem>>, vector<1x128xf32>
    %c1 = arith.constant 1 : index
    %c0_3 = arith.constant 0 : index
    %12 = vector.load %arg3[%c1, %c0_3] : memref<8x128xf32, #tpu.memory_space<vmem>>, vector<1x128xf32>
    tpu.vector_store %arg3[%c1, %c0_3], %11 {strides = array<i32>} : memref<8x128xf32, #tpu.memory_space<vmem>>, vector<1x128xf32>,
    %c2_i32 = arith.constant 2 : i32
    %13 = arith.addi %0, %c2_i32 : i32
    %14 = arith.index_cast %13 : i32 to index
    %15 = memref.load %arg1[%14] : memref<16xi32, #tpu.memory_space<smem>>
    %16 = arith.index_cast %15 : i32 to index
    %c0_4 = arith.constant 0 : index
    %17 = vector.load %arg2[%16, %c0_4] : memref<8x128xf32, #tpu.memory_space<vmem>>, vector<1x128xf32>
    %c2 = arith.constant 2 : index
    %c0_5 = arith.constant 0 : index
    %18 = vector.load %arg3[%c2, %c0_5] : memref<8x128xf32, #tpu.memory_space<vmem>>, vector<1x128xf32>
    tpu.vector_store %arg3[%c2, %c0_5], %17 {strides = array<i32>} : memref<8x128xf32, #tpu.memory_space<vmem>>, vector<1x128xf32>,
    %c3_i32 = arith.constant 3 : i32
    %19 = arith.addi %0, %c3_i32 : i32
    %20 = arith.index_cast %19 : i32 to index
    %21 = memref.load %arg1[%20] : memref<16xi32, #tpu.memory_space<smem>>
    %22 = arith.index_cast %21 : i32 to index
    %c0_6 = arith.constant 0 : index
    %23 = vector.load %arg2[%22, %c0_6] : memref<8x128xf32, #tpu.memory_space<vmem>>, vector<1x128xf32>
    %c3 = arith.constant 3 : index
    %c0_7 = arith.constant 0 : index
    %24 = vector.load %arg3[%c3, %c0_7] : memref<8x128xf32, #tpu.memory_space<vmem>>, vector<1x128xf32>
    tpu.vector_store %arg3[%c3, %c0_7], %23 {strides = array<i32>} : memref<8x128xf32, #tpu.memory_space<vmem>>, vector<1x128xf32>,
    %c4_i32 = arith.constant 4 : i32
    %25 = arith.addi %0, %c4_i32 : i32
    %26 = arith.index_cast %25 : i32 to index
    %27 = memref.load %arg1[%26] : memref<16xi32, #tpu.memory_space<smem>>
    %28 = arith.index_cast %27 : i32 to index
    %c0_8 = arith.constant 0 : index
    %29 = vector.load %arg2[%28, %c0_8] : memref<8x128xf32, #tpu.memory_space<vmem>>, vector<1x128xf32>
    %c4 = arith.constant 4 : index
    %c0_9 = arith.constant 0 : index
    %30 = vector.load %arg3[%c4, %c0_9] : memref<8x128xf32, #tpu.memory_space<vmem>>, vector<1x128xf32>
    tpu.vector_store %arg3[%c4, %c0_9], %29 {strides = array<i32>} : memref<8x128xf32, #tpu.memory_space<vmem>>, vector<1x128xf32>,
    %c5_i32 = arith.constant 5 : i32
    %31 = arith.addi %0, %c5_i32 : i32
    %32 = arith.index_cast %31 : i32 to index
    %33 = memref.load %arg1[%32] : memref<16xi32, #tpu.memory_space<smem>>
    %34 = arith.index_cast %33 : i32 to index
    %c0_10 = arith.constant 0 : index
    %35 = vector.load %arg2[%34, %c0_10] : memref<8x128xf32, #tpu.memory_space<vmem>>, vector<1x128xf32>
    %c5 = arith.constant 5 : index
    %c0_11 = arith.constant 0 : index
    %36 = vector.load %arg3[%c5, %c0_11] : memref<8x128xf32, #tpu.memory_space<vmem>>, vector<1x128xf32>
    tpu.vector_store %arg3[%c5, %c0_11], %35 {strides = array<i32>} : memref<8x128xf32, #tpu.memory_space<vmem>>, vector<1x128xf32>,
    %c6_i32 = arith.constant 6 : i32
    %37 = arith.addi %0, %c6_i32 : i32
    %38 = arith.index_cast %37 : i32 to index
    %39 = memref.load %arg1[%38] : memref<16xi32, #tpu.memory_space<smem>>
    %40 = arith.index_cast %39 : i32 to index
    %c0_12 = arith.constant 0 : index
    %41 = vector.load %arg2[%40, %c0_12] : memref<8x128xf32, #tpu.memory_space<vmem>>, vector<1x128xf32>
    %c6 = arith.constant 6 : index
    %c0_13 = arith.constant 0 : index
    %42 = vector.load %arg3[%c6, %c0_13] : memref<8x128xf32, #tpu.memory_space<vmem>>, vector<1x128xf32>
    tpu.vector_store %arg3[%c6, %c0_13], %41 {strides = array<i32>} : memref<8x128xf32, #tpu.memory_space<vmem>>, vector<1x128xf32>,
    %c7_i32 = arith.constant 7 : i32
    %43 = arith.addi %0, %c7_i32 : i32
    %44 = arith.index_cast %43 : i32 to index
    %45 = memref.load %arg1[%44] : memref<16xi32, #tpu.memory_space<smem>>
    %46 = arith.index_cast %45 : i32 to index
    %c0_14 = arith.constant 0 : index
    %47 = vector.load %arg2[%46, %c0_14] : memref<8x128xf32, #tpu.memory_space<vmem>>, vector<1x128xf32>
    %c7 = arith.constant 7 : index
    %c0_15 = arith.constant 0 : index
    %48 = vector.load %arg3[%c7, %c0_15] : memref<8x128xf32, #tpu.memory_space<vmem>>, vector<1x128xf32>
    tpu.vector_store %arg3[%c7, %c0_15], %47 {strides = array<i32>} : memref<8x128xf32, #tpu.memory_space<vmem>>, vector<1x128xf32>,
    %c0_16 = arith.constant 0 : index
    %c0_17 = arith.constant 0 : index
    %49 = vector.load %arg3[%c0_16, %c0_17] : memref<8x128xf32, #tpu.memory_space<vmem>>, vector<8x128xf32>
    %50 = arith.mulf %49, %49 : vector<8x128xf32>
    %cst = arith.constant dense<0.000000e+00> : vector<8xf32>
    %51 = vector.multi_reduction <add>, %50, %cst [1] : vector<8x128xf32> to vector<8xf32>
    %52 = vector.shape_cast %51 : vector<8xf32> to vector<8x1xf32>
    %53 = math.sqrt %52 : vector<8x1xf32>
    %cst_18 = arith.constant 1.000000e+00 : f32
    %54 = vector.broadcast %cst_18 : f32 to vector<8x1xf32>
    %55 = arith.cmpf ogt, %53, %54 : vector<8x1xf32>
    %cst_19 = arith.constant 1.000000e-07 : f32
    %56 = vector.broadcast %cst_19 : f32 to vector<8x1xf32>
    %57 = arith.addf %53, %56 : vector<8x1xf32>
    %cst_20 = arith.constant 1.000000e+00 : f32
    %58 = vector.broadcast %cst_20 : f32 to vector<8x1xf32>
    %59 = arith.divf %58, %57 : vector<8x1xf32>
    %cst_21 = arith.constant 1.000000e+00 : f32
    %60 = vector.broadcast %cst_21 : f32 to vector<8x1xf32>
    %61 = arith.select %55, %59, %60 : vector<8x1xi1>, vector<8x1xf32>
    %62 = vector.broadcast %61 : vector<8x1xf32> to vector<8x128xf32>
    %63 = arith.mulf %49, %62 : vector<8x128xf32>
    %c0_22 = arith.constant 0 : index
    %c0_23 = arith.constant 0 : index
    %64 = vector.load %arg3[%c0_22, %c0_23] : memref<8x128xf32, #tpu.memory_space<vmem>>, vector<8x128xf32>
    tpu.vector_store %arg3[%c0_22, %c0_23], %63 {strides = array<i32>} : memref<8x128xf32, #tpu.memory_space<vmem>>, vector<8x128xf32>,
    return
  }
  func.func @transform_0(%arg0: i32, %arg1: memref<16xi32, #tpu.memory_space<smem>>) -> (i32, i32) {
    %c0_i32 = arith.constant 0 : i32
    %c0_i32_0 = arith.constant 0 : i32
    %c0_i32_1 = arith.constant 0 : i32
    return %c0_i32, %c0_i32_0 : i32, i32
  }
  func.func @transform_1(%arg0: i32, %arg1: memref<16xi32, #tpu.memory_space<smem>>) -> (i32, i32) {
    %c0_i32 = arith.constant 0 : i32
    %c0_i32_0 = arith.constant 0 : i32
    return %arg0, %c0_i32 : i32, i32
  }
}

</mosaic_0001>

<llo_original>
// kernel: tpu_custom_call.1
$region0: #{tpu_custom_call.1}
  #allocation0 [shape = 'u32[]', space=smem, size = 0x4, offset = 0x4, fixed_abs, tag = 'smem constant byte address 0x4 - core index']
  #allocation1 [shape = 'u32[144,128]{1,0:T(1,128)}', space=vmem, size = 0x12000, scoped, tag = 'internal scratch']
  #allocation2 [shape = 's32[1]{0}', space=sflag, size = 0x4, scoped, tag = 'scoped memory for tpu_custom_call.1']
  #allocation3 [shape = 'u8[512]{0}', space=smem, size = 0x200, scoped, tag = 'prefetched SMEM operand 0']
  %s0 = inlined_call_operand.hbm [shape: s32[16], index: 0, kind: input, shape index: {}]
  %s1 = inlined_call_operand.hbm [shape: f32[8,128], index: 1, kind: input, shape index: {}]
  %s2 = inlined_call_operand.hbm [shape: f32[16,128], index: 2, kind: output, shape index: {}]
  %s3 = sld [smem:[#allocation0]]
  $region41: #{tpu_custom_call.1} parent=0
    _
  %s5 = ssub.s32 1, %s3
  %s6 = scalar_select 0, %s5, %s3
  %8 = dma.hbm_to_smem %s0, 16, [#allocation3], [#allocation2]
  %9 = dma.done [#allocation2], 16
  %10 = sfence
  $region1: #{tpu_custom_call.1} parent=0
    #allocation4 [shape = 'u8[4096]{0}', space=vmem, size = 0x1000, scoped, tag = 'input window, operand 1, single buffered']
    #allocation5 [shape = 's32[2]{0}', space=sflag, size = 0x8, scoped, tag = 'scoped memory for tpu_custom_call.1']
    #allocation6 [shape = 's32[2]{0}', space=sflag, size = 0x8, scoped, tag = 'scoped memory for tpu_custom_call.1']
    #allocation7 [shape = 'u8[8192]{0}', space=vmem, size = 0x2000, scoped, tag = 'output window, operand 0']
    %11 = vsyncpa [#allocation5], 0
    %12 = vsyncpa [#allocation6], 0
    %s13 = scalar_lea.sflag [#allocation6], 1
    %14 = vsyncpa %s13, 0
    loop: start=0, step=1, limit=4
    $region2: #{tpu_custom_call.1} parent=1 // loop_pre_header
      _
    $region3: #{tpu_custom_call.1} parent=1 // loop_header
      %s16 = sphi 0, %s20
      %p17 = scmp.ge.s32.totalorder %s16, 4
      %s24 = sphi 0, %s24
      %s26 = sphi 0, %s24
      %s27 = sphi 0, %s26
      %s41 = sphi 0, %s27
      %s47 = sphi 0, %s49
      %s50 = sphi 0, %s47
      %s51 = sphi 0, %s50
      %s67 = sphi 0, %s51
    $region4: #{tpu_custom_call.1} parent=1 // loop_header_branch
      %19 = sbr.rel (%p17) target = $region8
    $region5: #{tpu_custom_call.1} parent=1 // loop_body
      %s21 = ssub.s32 %s16, 1
      %s22 = ssub.s32 %s16, 2
      %s23 = sadd.s32 %s16, 1
      %s25 = sadd.s32 %s24, 1
      %p28 = scmp.eq.s32.totalorder %s16, 1
      %p29 = scmp.ne.s32.totalorder %s24, %s26
      %p30 = scmp.eq.s32.totalorder %s16, 0
      %p31 = por %p29, %p30
      %p32 = scmp.ne.s32.totalorder %s24, %s26
      %p33 = scmp.eq.s32.totalorder %s21, 1
      %p34 = por %p32, %p33
      %p35 = scmp.ne.s32.totalorder %s26, %s27
      %p36 = scmp.eq.s32.totalorder %s21, 0
      %p37 = por %p35, %p36
      %p38 = scmp.ne.s32.totalorder %s26, %s27
      %p39 = scmp.eq.s32.totalorder %s22, 1
      %p40 = por %p38, %p39
      %p42 = scmp.ne.s32.totalorder %s27, %s41
      %p43 = scmp.eq.s32.totalorder %s22, 0
      %p44 = por %p42, %p43
      %s45 = ssub.s32 %s16, %s23
      %p46 = scmp.eq.s32.totalorder %s45, 0
      %s48 = sadd.s32 %s47, 1
      %s49 = scalar_select %p46, %s47, %s48
      %p52 = pneg %p46
      %p53 = scmp.eq.s32.totalorder %s16, 1
      %p54 = por %p52, %p53
      %p55 = scmp.ne.s32.totalorder %s47, %s50
      %p56 = scmp.eq.s32.totalorder %s16, 0
      %p57 = por %p55, %p56
      %p58 = scmp.ne.s32.totalorder %s47, %s50
      %p59 = scmp.eq.s32.totalorder %s21, 1
      %p60 = por %p58, %p59
      %p61 = scmp.ne.s32.totalorder %s50, %s51
      %p62 = scmp.eq.s32.totalorder %s21, 0
      %p63 = por %p61, %p62
      %p64 = scmp.ne.s32.totalorder %s50, %s51
      %p65 = scmp.eq.s32.totalorder %s22, 1
      %p66 = por %p64, %p65
      %p68 = scmp.ne.s32.totalorder %s51, %s67
      %p69 = scmp.eq.s32.totalorder %s22, 0
      %p70 = por %p68, %p69
      %p71 = scmp.le.s32.totalorder 1, %s16
      %p72 = scmp.lt.s32.totalorder %s16, 3
      %p73 = pnand %p71, %p72
      %p74 = pneg %p73
      // Predicated region
      $region9: #{tpu_custom_call.1} parent=5 // pred_check
        _
      $region10: #{tpu_custom_call.1} parent=5 // pred_check_branch
        %76 = sbr.rel (%p73) target = $region12
      $region11: #{tpu_custom_call.1} parent=5 // pred_region
        %s77 = ssub.s32 %s16, 1
        // Predicated region
        $region13: #{tpu_custom_call.1} parent=11 // pred_check
          %p78 = pneg %p37
        $region14: #{tpu_custom_call.1} parent=11 // pred_check_branch
          %80 = sbr.rel (%p78) target = $region16
        $region15: #{tpu_custom_call.1} parent=11 // pred_region
          %s82 = ssub.s32 128, 128
          %83 = vsyncadd [#allocation5], %s82
          %s85 = sshll.u32 [#allocation4], 4
          %s86 = int_to_ptr.vmem [resolvable:$true] %s85
          %88 = dma.hbm_to_vmem [thread:$0]  %s1, 128, %s86, [#allocation5]
        $region16: #{tpu_custom_call.1} parent=11 // pred_fallthru
          _
      $region12: #{tpu_custom_call.1} parent=5 // pred_fallthru
        _
      %p89 = scmp.lt.s32.totalorder %s16, 2
      // Predicated region
      $region17: #{tpu_custom_call.1} parent=5 // pred_check
        %p90 = pneg %p89
      $region18: #{tpu_custom_call.1} parent=5 // pred_check_branch
        %92 = sbr.rel (%p90) target = $region20
      $region19: #{tpu_custom_call.1} parent=5 // pred_region
        _
      $region20: #{tpu_custom_call.1} parent=5 // pred_fallthru
        _
      %p93 = scmp.le.s32.totalorder 1, %s16
      %p94 = scmp.lt.s32.totalorder %s16, 3
      %p95 = pnand %p93, %p94
      %p96 = pneg %p95
      // Predicated region
      $region21: #{tpu_custom_call.1} parent=5 // pred_check
        _
      $region22: #{tpu_custom_call.1} parent=5 // pred_check_branch
        %98 = sbr.rel (%p95) target = $region24
      $region23: #{tpu_custom_call.1} parent=5 // pred_region
        %s99 = ssub.s32 %s16, 1
        // Predicated region
        $region25: #{tpu_custom_call.1} parent=23 // pred_check
          %p100 = pneg %p37
        $region26: #{tpu_custom_call.1} parent=23 // pred_check_branch
          %102 = sbr.rel (%p100) target = $region28
        $region27: #{tpu_custom_call.1} parent=23 // pred_region
          %103 = dma.done [#allocation5], 128
        $region28: #{tpu_custom_call.1} parent=23 // pred_fallthru
          _
        %p104 = pneg %p37
        %p105 = pneg %p34
        %p106 = pneg %p63
        %p107 = pneg %p60
        %s108 = sand.u32 %s50, 1
        %s109 = scalar_lea.sflag [#allocation6], %s108
        %s110 = sand.u32 %s50, 1
        %s111 = smul.addr %s110, 8
        %s112 = scalar_lea.vmem [#allocation7], %s111
        %s113 = smul.u32 %s21, 8
        %s114 = sld [smem:[#allocation3 + %s113]]
        %s115 = scalar_lea.vmem [#allocation4], %s114
        %v116 = vld [vmem:[%s115] sm:$0x1]
        %117 = vst [vmem:[%s112] sm:$0x1] %v116
        %s118 = sadd.s32 %s113, 1
        %s119 = sld [smem:[#allocation3 + %s118]]
        %s120 = scalar_lea.vmem [#allocation4], %s119
        %v121 = vld [vmem:[%s120] sm:$0x1]
        %122 = vst [vmem:[%s112 + $0x1] sm:$0x1] %v121
        %s123 = sadd.s32 %s113, 2
        %s124 = sld [smem:[#allocation3 + %s123]]
        %s125 = scalar_lea.vmem [#allocation4], %s124
        %v126 = vld [vmem:[%s125] sm:$0x1]
        %127 = vst [vmem:[%s112 + $0x2] sm:$0x1] %v126
        %s128 = sadd.s32 %s113, 3
        %s129 = sld [smem:[#allocation3 + %s128]]
        %s130 = scalar_lea.vmem [#allocation4], %s129
        %v131 = vld [vmem:[%s130] sm:$0x1]
        %132 = vst [vmem:[%s112 + $0x3] sm:$0x1] %v131
        %s133 = sadd.s32 %s113, 4
        %s134 = sld [smem:[#allocation3 + %s133]]
        %s135 = scalar_lea.vmem [#allocation4], %s134
        %v136 = vld [vmem:[%s135] sm:$0x1]
        %137 = vst [vmem:[%s112 + $0x4] sm:$0x1] %v136
        %s138 = sadd.s32 %s113, 5
        %s139 = sld [smem:[#allocation3 + %s138]]
        %s140 = scalar_lea.vmem [#allocation4], %s139
        %v141 = vld [vmem:[%s140] sm:$0x1]
        %142 = vst [vmem:[%s112 + $0x5] sm:$0x1] %v141
        %s143 = sadd.s32 %s113, 6
        %s144 = sld [smem:[#allocation3 + %s143]]
        %s145 = scalar_lea.vmem [#allocation4], %s144
        %v146 = vld [vmem:[%s145] sm:$0x1]
        %147 = vst [vmem:[%s112 + $0x6] sm:$0x1] %v146
        %s148 = sadd.s32 %s113, 7
        %s149 = sld [smem:[#allocation3 + %s148]]
        %s150 = scalar_lea.vmem [#allocation4], %s149
        %v151 = vld [vmem:[%s150] sm:$0x1]
        %152 = vst [vmem:[%s112 + $0x7] sm:$0x1] %v151
        %v153 = vld [vmem:[%s112] sm:$0xff]
        %v154 = vmul.f32 %v153, %v153
        %155 = vadd.xlane.f32.xlu0 %v154
        %v156 = vpop.xlane.xlu0 %155
        %v157 = vrsqrt.pop %v156
        %v158 = vmul.f32 %v156, %v157
        %vm159 = vcmp.eq.f32.partialorder %v156, inf
        %v160 = vsel %vm159, %v156, %v158
        %vm161 = vcmp.eq.f32.partialorder %v156, 0.0
        %v162 = vand.u32 %v156, 2147483648
        %v163 = vsel %vm161, %v162, %v160
        %vm164 = vcmp.gt.f32.partialorder %v163, 1.0
        %v165 = vadd.f32 %v163, 1e-07
        %v166 = vrcp.pop %v165
        %v167 = vmul.f32 1.0, %v166
        %v168 = vsel %vm164, %v167, 1.0
        %v169 = vmul.f32 %v153, %v168
        %170 = vst [vmem:[%s112] sm:$0xff] %v169
        %s171 = sand.u32 %s50, 1
        %s172 = scalar_lea.sflag [#allocation6], %s171
        %s173 = sand.u32 %s50, 1
        %s174 = smul.addr %s173, 8
        %s175 = scalar_lea.vmem [#allocation7], %s174
        // Predicated region
        $region29: #{tpu_custom_call.1} parent=23 // pred_check
          %p176 = pneg %p60
        $region30: #{tpu_custom_call.1} parent=23 // pred_check_branch
          %178 = sbr.rel (%p176) target = $region32
        $region31: #{tpu_custom_call.1} parent=23 // pred_region
          %s180 = ssub.s32 128, 128
          %181 = vsyncadd %s172, %s180
          %s182 = smul.addr %s21, 128
          %s183 = scalar_lea.hbm %s2, %s182
          %s185 = sshll.u32 %s175, 4
          %s186 = int_to_ptr.vmem [resolvable:$true] %s185
          %188 = dma.vmem_to_hbm [thread:$0]  %s186, 128, %s183, %s172
        $region32: #{tpu_custom_call.1} parent=23 // pred_fallthru
          _
      $region24: #{tpu_custom_call.1} parent=5 // pred_fallthru
        _
      %p189 = scmp.le.s32.totalorder 2, %s16
      // Predicated region
      $region33: #{tpu_custom_call.1} parent=5 // pred_check
        %p190 = pneg %p189
      $region34: #{tpu_custom_call.1} parent=5 // pred_check_branch
        %192 = sbr.rel (%p190) target = $region36
      $region35: #{tpu_custom_call.1} parent=5 // pred_region
        %s193 = ssub.s32 %s16, 2
        // Predicated region
        $region37: #{tpu_custom_call.1} parent=35 // pred_check
          %p194 = pneg %p66
        $region38: #{tpu_custom_call.1} parent=35 // pred_check_branch
          %196 = sbr.rel (%p194) target = $region40
        $region39: #{tpu_custom_call.1} parent=35 // pred_region
          %s197 = sand.u32 %s51, 1
          %s198 = scalar_lea.sflag [#allocation6], %s197
          %s199 = sand.u32 %s51, 1
          %s200 = smul.addr %s199, 8
          %s201 = scalar_lea.vmem [#allocation7], %s200
          %202 = dma.done %s198, 128
        $region40: #{tpu_custom_call.1} parent=35 // pred_fallthru
          _
      $region36: #{tpu_custom_call.1} parent=5 // pred_fallthru
        _
    $region6: #{tpu_custom_call.1} parent=1 // loop_footer
      %s20 = sadd.s32 1, %s16
    $region7: #{tpu_custom_call.1} parent=1 // loop_footer_branch
      %15 = sbr.rel target = $region3
    $region8: #{tpu_custom_call.1} parent=1 // loop_exit
      _
    %203 = vsyncpa [#allocation5], 1
    %s204 = scalar_lea.sflag [#allocation5], 1
    %205 = vsyncpa %s204, 1
    %206 = vsyncpa [#allocation6], 1
    %s207 = scalar_lea.sflag [#allocation6], 1
    %208 = vsyncpa %s207, 1

</llo_original>
